<compile_context>
chip_gen: v7x
topology: tpu7x:2x2x1
jax: 0.10.0
libtpu: 0.0.40
codegen_flags: <defaults>
</compile_context>

<pallas_src>
import functools

import jax
import jax.numpy as jnp
from jax import lax
from jax.experimental import pallas as pl
from jax.experimental.pallas import tpu as pltpu

LANE = 128
MAX_TILE_N = 512


def _round_up(x, m):
    return ((x + m - 1) // m) * m


# ----------------------------------------------------------------------------
# Fused kernel: pLDDT head (+ compute_plddt) and experimentally-resolved head
# ----------------------------------------------------------------------------
def _aux_heads_kernel(
    s_plddt_ref,  # [tile_n, cs_p]  sm single embedding (row tile, zero-padded lanes)
    s_er_ref,     # [tile_n, cs_p]  single embedding   (row tile, zero-padded lanes)
    g_ref,        # [1, cs_p]       layernorm gamma    (resident, zero-padded)
    beta_ref,     # [1, cs_p]       layernorm beta     (resident, zero-padded)
    w1_ref,       # [cs_p, ch_p]    (resident, zero-padded)
    b1_ref,       # [1, ch_p]
    w2_ref,       # [ch_p, ch_p]
    b2_ref,       # [1, ch_p]
    w3_ref,       # [ch_p, nb_p]
    b3_ref,       # [1, nb_p]
    we_ref,       # [cs_p, co_p]
    be_ref,       # [1, co_p]
    slab_ref,     # [tile_n, nb_p]  out: lanes [0:no_bins] = logits, lane no_bins = plddt
    er_ref,       # [tile_n, co_p]  out: exp-resolved logits (lanes [0:c_out] valid)
    *,
    no_bins,
    c_s,
):
    s = s_plddt_ref[...].astype(jnp.float32)
    cs_p = s.shape[-1]

    # LayerNorm over the real channel dim (eps = 1e-5, PyTorch default).
    # Padded lanes are zero, so sums are exact; divide by the true c_s and mask
    # the centered values before computing the variance.
    inv_cs = 1.0 / float(c_s)
    ch_idx = lax.broadcasted_iota(jnp.int32, (1, cs_p), 1)
    ch_mask = (ch_idx < c_s).astype(jnp.float32)
    mean = jnp.sum(s, axis=-1, keepdims=True) * inv_cs
    centered = (s - mean) * ch_mask
    var = jnp.sum(centered * centered, axis=-1, keepdims=True) * inv_cs
    x = centered * lax.rsqrt(var + 1e-5)
    x = x * g_ref[...] + beta_ref[...]

    # MLP (padded hidden / out columns have zero weights & bias -> exact).
    h = jnp.dot(x, w1_ref[...], preferred_element_type=jnp.float32) + b1_ref[...]
    h = jnp.maximum(h, 0.0)
    h = jnp.dot(h, w2_ref[...], preferred_element_type=jnp.float32) + b2_ref[...]
    h = jnp.maximum(h, 0.0)
    logits = jnp.dot(h, w3_ref[...], preferred_element_type=jnp.float32) + b3_ref[...]

    # compute_plddt: masked softmax over the real bins, expectation of bin
    # centers, scaled by 100 (folded into the centers).
    nb_p = logits.shape[-1]
    lane_idx = lax.broadcasted_iota(jnp.int32, (1, nb_p), 1)
    real = lane_idx < no_bins
    masked = jnp.where(real, logits, -1e30)
    m = jnp.max(masked, axis=-1, keepdims=True)
    e = jnp.exp(masked - m)
    denom = jnp.sum(e, axis=-1, keepdims=True)
    probs = e * pl.reciprocal(denom, approx=True)
    bin_width = 1.0 / no_bins
    centers = (lane_idx.astype(jnp.float32) + 0.5) * (bin_width * 100.0)
    plddt_col = jnp.sum(probs * centers, axis=-1, keepdims=True)  # [tile_n, 1]

    # Pack logits + plddt into one lane-dense 128-wide slab store.
    slab = jnp.where(lane_idx == no_bins, plddt_col, logits)
    slab_ref[...] = slab.astype(slab_ref.dtype)

    # Experimentally-resolved head: single Linear on the other embedding.
    se = s_er_ref[...].astype(jnp.float32)
    er = jnp.dot(se, we_ref[...], preferred_element_type=jnp.float32) + be_ref[...]
    er_ref[...] = er.astype(er_ref.dtype)


# ----------------------------------------------------------------------------
# Wrapper
# ----------------------------------------------------------------------------
@jax.jit
def _aux_heads(s_plddt, s_er, gamma, beta, w1, b1, w2, b2, w3, b3, w_er, b_er):
    n_res, c_s = s_plddt.shape
    c_hidden = w1.shape[-1]
    no_bins = w3.shape[-1]
    c_out = w_er.shape[-1]

    # Lane-dense padded widths (zero padding -> mathematically exact).
    cs_p = _round_up(c_s, LANE)
    ch_p = _round_up(c_hidden, LANE)
    nb_p = _round_up(no_bins + 1, LANE)  # +1 spare lane carries plddt
    co_p = _round_up(c_out, LANE)

    # Row tiling over N_res (sublane-aligned); pad N to a tile multiple.
    tile_n = min(MAX_TILE_N, _round_up(n_res, 8))
    n_pad = _round_up(n_res, tile_n)

    def pad2(a, rows, cols):
        return jnp.pad(a, ((0, rows - a.shape[0]), (0, cols - a.shape[1])))

    f32 = jnp.float32
    s_p = pad2(s_plddt.astype(f32), n_pad, cs_p)
    s_e = pad2(s_er.astype(f32), n_pad, cs_p)
    g = pad2(gamma.astype(f32).reshape(1, c_s), 1, cs_p)
    bt = pad2(beta.astype(f32).reshape(1, c_s), 1, cs_p)
    w1p = pad2(w1.astype(f32), cs_p, ch_p)
    b1p = pad2(b1.astype(f32), 1, ch_p)
    w2p = pad2(w2.astype(f32), ch_p, ch_p)
    b2p = pad2(b2.astype(f32), 1, ch_p)
    w3p = pad2(w3.astype(f32), ch_p, nb_p)
    b3p = pad2(b3.astype(f32), 1, nb_p)
    wep = pad2(w_er.astype(f32), cs_p, co_p)
    bep = pad2(b_er.astype(f32), 1, co_p)

    grid = (n_pad // tile_n,)

    def row_spec(cols):
        return pl.BlockSpec((tile_n, cols), lambda i: (i, 0))

    def resident(shape):
        # Constant block index -> stays VMEM-resident across grid steps.
        return pl.BlockSpec(shape, lambda i: (0, 0))

    kernel = functools.partial(_aux_heads_kernel, no_bins=no_bins, c_s=c_s)

    slab, er = pl.pallas_call(
        kernel,
        out_shape=(
            jax.ShapeDtypeStruct((n_pad, nb_p), f32),
            jax.ShapeDtypeStruct((n_pad, co_p), f32),
        ),
        grid=grid,
        in_specs=[
            row_spec(cs_p),           # s (plddt)
            row_spec(cs_p),           # s (exp resolved)
            resident(g.shape), resident(bt.shape),
            resident(w1p.shape), resident(b1p.shape),
            resident(w2p.shape), resident(b2p.shape),
            resident(w3p.shape), resident(b3p.shape),
            resident(wep.shape), resident(bep.shape),
        ],
        out_specs=(row_spec(nb_p), row_spec(co_p)),
        compiler_params=pltpu.CompilerParams(
            dimension_semantics=("parallel",),
        ),
    )(s_p, s_e, g, bt, w1p, b1p, w2p, b2p, w3p, b3p, wep, bep)

    lddt_logits = slab[:n_res, :no_bins]
    plddt = slab[:n_res, no_bins]
    er_logits = er[:n_res, :c_out]
    return lddt_logits, plddt, er_logits


def auxiliary_heads_forward(outputs, params, tm_enabled=False):
    """Mirror of AuxiliaryHeads.forward (tm branch disabled)."""
    aux_out = {}
    p = params["plddt"]
    e = params["exp_resolved"]
    lddt_logits, plddt, er_logits = _aux_heads(
        outputs["sm"]["single"], outputs["single"],
        p["ln_gamma"], p["ln_beta"],
        p["w1"], p["b1"], p["w2"], p["b2"], p["w3"], p["b3"],
        e["w"], e["b"],
    )
    aux_out["lddt_logits"] = lddt_logits
    aux_out["plddt"] = plddt
    aux_out["experimentally_resolved_logits"] = er_logits
    # TODO(synk): TM head (config.tm.enabled=True path) not implemented — disabled in this config.
    return aux_out


# ----------------------------------------------------------------------------
# Pure-JAX reference for verification
# ----------------------------------------------------------------------------
def _ref_forward(outputs, params):
    p = params["plddt"]
    s = outputs["sm"]["single"].astype(jnp.float32)
    mean = jnp.mean(s, axis=-1, keepdims=True)
    var = jnp.mean((s - mean) ** 2, axis=-1, keepdims=True)
    x = (s - mean) / jnp.sqrt(var + 1e-5) * p["ln_gamma"] + p["ln_beta"]
    h = jnp.maximum(x @ p["w1"] + p["b1"], 0.0)
    h = jnp.maximum(h @ p["w2"] + p["b2"], 0.0)
    logits = h @ p["w3"] + p["b3"]
    nb = logits.shape[-1]
    centers = (jnp.arange(nb, dtype=jnp.float32) + 0.5) / nb
    probs = jax.nn.softmax(logits, axis=-1)
    plddt = jnp.sum(probs * centers[None, :], axis=-1) * 100.0
    er = outputs["single"] @ params["exp_resolved"]["w"] + params["exp_resolved"]["b"]
    return {"lddt_logits": logits, "plddt": plddt,
            "experimentally_resolved_logits": er}


# ----------------------------------------------------------------------------
# Main
# ----------------------------------------------------------------------------
if __name__ == "__main__":
    # Small, module-consistent shapes.
    N_RES = 8        # residues
    C_S = 32         # single-embedding channels (c_in == c_s)
    C_HIDDEN = 32    # plddt hidden
    NO_BINS = 16     # plddt bins
    C_OUT = 16       # experimentally-resolved output bins

    key = jax.random.PRNGKey(0)
    ks = jax.random.split(key, 12)

    outputs = {
        "sm": {"single": jax.random.normal(ks[0], (N_RES, C_S), jnp.float32)},
        "single": jax.random.normal(ks[1], (N_RES, C_S), jnp.float32),
    }

    params = {
        "plddt": {
            "ln_gamma": jnp.ones((1, C_S), jnp.float32),
            "ln_beta": jnp.zeros((1, C_S), jnp.float32),
            "w1": jax.random.normal(ks[2], (C_S, C_HIDDEN), jnp.float32) * 0.1,
            "b1": jax.random.normal(ks[3], (1, C_HIDDEN), jnp.float32) * 0.01,
            "w2": jax.random.normal(ks[4], (C_HIDDEN, C_HIDDEN), jnp.float32) * 0.1,
            "b2": jax.random.normal(ks[5], (1, C_HIDDEN), jnp.float32) * 0.01,
            "w3": jax.random.normal(ks[6], (C_HIDDEN, NO_BINS), jnp.float32) * 0.1,
            "b3": jax.random.normal(ks[7], (1, NO_BINS), jnp.float32) * 0.01,
        },
        "exp_resolved": {
            "w": jax.random.normal(ks[8], (C_S, C_OUT), jnp.float32) * 0.1,
            "b": jax.random.normal(ks[9], (1, C_OUT), jnp.float32) * 0.01,
        },
    }

    aux = auxiliary_heads_forward(outputs, params, tm_enabled=False)
    jax.block_until_ready(aux)

    ref = _ref_forward(outputs, params)
    assert aux["lddt_logits"].shape == (N_RES, NO_BINS)
    assert aux["plddt"].shape == (N_RES,)
    assert aux["experimentally_resolved_logits"].shape == (N_RES, C_OUT)

    assert jnp.allclose(aux["lddt_logits"], ref["lddt_logits"],
                        atol=1e-4, rtol=1e-4), "lddt_logits"
    assert jnp.allclose(aux["experimentally_resolved_logits"],
                        ref["experimentally_resolved_logits"],
                        atol=1e-4, rtol=1e-4), "experimentally_resolved_logits"
    # plddt uses the EUP approximate reciprocal in the softmax; relative error
    # ~2^-12 on a [0, 100]-scaled expectation -> allow a slightly looser atol.
    assert jnp.allclose(aux["plddt"], ref["plddt"], atol=5e-2, rtol=1e-3), "plddt"

    print("KERNEL_OK")
</pallas_src>

<mosaic_0001>
module attributes {stable_mosaic.version = 11 : i64} {
  func.func @_aux_heads_kernel(%arg0: i32, %arg1: memref<8x128xf32, #tpu.memory_space<vmem>>, %arg2: memref<8x128xf32, #tpu.memory_space<vmem>>, %arg3: memref<1x128xf32, #tpu.memory_space<vmem>>, %arg4: memref<1x128xf32, #tpu.memory_space<vmem>>, %arg5: memref<128x128xf32, #tpu.memory_space<vmem>>, %arg6: memref<1x128xf32, #tpu.memory_space<vmem>>, %arg7: memref<128x128xf32, #tpu.memory_space<vmem>>, %arg8: memref<1x128xf32, #tpu.memory_space<vmem>>, %arg9: memref<128x128xf32, #tpu.memory_space<vmem>>, %arg10: memref<1x128xf32, #tpu.memory_space<vmem>>, %arg11: memref<128x128xf32, #tpu.memory_space<vmem>>, %arg12: memref<1x128xf32, #tpu.memory_space<vmem>>, %arg13: memref<8x128xf32, #tpu.memory_space<vmem>>, %arg14: memref<8x128xf32, #tpu.memory_space<vmem>>) attributes {dimension_semantics = [#tpu.dimension_semantics<parallel>], iteration_bounds = array<i64: 1>, scalar_prefetch = 0 : i64, scratch_operands = 0 : i64, tpu.core_type = #tpu.core_type<tc>, window_params = [{transform_indices = @transform_0, window_bounds = array<i64: 8, 128>}, {transform_indices = @transform_1, window_bounds = array<i64: 8, 128>}, {pipeline_mode = #tpu.pipeline_mode<synchronous>, transform_indices = @transform_2, window_bounds = array<i64: 1, 128>}, {pipeline_mode = #tpu.pipeline_mode<synchronous>, transform_indices = @transform_3, window_bounds = array<i64: 1, 128>}, {pipeline_mode = #tpu.pipeline_mode<synchronous>, transform_indices = @transform_4, window_bounds = array<i64: 128, 128>}, {pipeline_mode = #tpu.pipeline_mode<synchronous>, transform_indices = @transform_5, window_bounds = array<i64: 1, 128>}, {pipeline_mode = #tpu.pipeline_mode<synchronous>, transform_indices = @transform_6, window_bounds = array<i64: 128, 128>}, {pipeline_mode = #tpu.pipeline_mode<synchronous>, transform_indices = @transform_7, window_bounds = array<i64: 1, 128>}, {pipeline_mode = #tpu.pipeline_mode<synchronous>, transform_indices = @transform_8, window_bounds = array<i64: 128, 128>}, {pipeline_mode = #tpu.pipeline_mode<synchronous>, transform_indices = @transform_9, window_bounds = array<i64: 1, 128>}, {pipeline_mode = #tpu.pipeline_mode<synchronous>, transform_indices = @transform_10, window_bounds = array<i64: 128, 128>}, {pipeline_mode = #tpu.pipeline_mode<synchronous>, transform_indices = @transform_11, window_bounds = array<i64: 1, 128>}, {transform_indices = @transform_12, window_bounds = array<i64: 8, 128>}, {transform_indices = @transform_13, window_bounds = array<i64: 8, 128>}]} {
    %c0 = arith.constant 0 : index
    %c0_0 = arith.constant 0 : index
    %0 = vector.load %arg1[%c0, %c0_0] : memref<8x128xf32, #tpu.memory_space<vmem>>, vector<8x128xf32>
    %1 = tpu.iota {dimensions = array<i32: 1>} : vector<1x128xi32>
    %c32_i32 = arith.constant 32 : i32
    %2 = vector.broadcast %c32_i32 : i32 to vector<1x128xi32>
    %3 = arith.cmpi slt, %1, %2 : vector<1x128xi32>
    %4 = arith.extui %3 : vector<1x128xi1> to vector<1x128xi32>
    %5 = arith.sitofp %4 : vector<1x128xi32> to vector<1x128xf32>
    %cst = arith.constant dense<0.000000e+00> : vector<8xf32>
    %6 = vector.multi_reduction <add>, %0, %cst [1] : vector<8x128xf32> to vector<8xf32>
    %7 = vector.shape_cast %6 : vector<8xf32> to vector<8x1xf32>
    %cst_1 = arith.constant 3.125000e-02 : f32
    %8 = vector.broadcast %cst_1 : f32 to vector<8x1xf32>
    %9 = arith.mulf %7, %8 : vector<8x1xf32>
    %10 = vector.broadcast %9 : vector<8x1xf32> to vector<8x128xf32>
    %11 = arith.subf %0, %10 : vector<8x128xf32>
    %12 = vector.broadcast %5 : vector<1x128xf32> to vector<8x128xf32>
    %13 = arith.mulf %11, %12 : vector<8x128xf32>
    %14 = arith.mulf %13, %13 : vector<8x128xf32>
    %cst_2 = arith.constant dense<0.000000e+00> : vector<8xf32>
    %15 = vector.multi_reduction <add>, %14, %cst_2 [1] : vector<8x128xf32> to vector<8xf32>
    %16 = vector.shape_cast %15 : vector<8xf32> to vector<8x1xf32>
    %cst_3 = arith.constant 3.125000e-02 : f32
    %17 = vector.broadcast %cst_3 : f32 to vector<8x1xf32>
    %18 = arith.mulf %16, %17 : vector<8x1xf32>
    %cst_4 = arith.constant 9.99999974E-6 : f32
    %19 = vector.broadcast %cst_4 : f32 to vector<8x1xf32>
    %20 = arith.addf %18, %19 : vector<8x1xf32>
    %21 = math.rsqrt %20 : vector<8x1xf32>
    %22 = vector.broadcast %21 : vector<8x1xf32> to vector<8x128xf32>
    %23 = arith.mulf %13, %22 : vector<8x128xf32>
    %c0_5 = arith.constant 0 : index
    %c0_6 = arith.constant 0 : index
    %24 = vector.load %arg3[%c0_5, %c0_6] : memref<1x128xf32, #tpu.memory_space<vmem>>, vector<1x128xf32>
    %25 = vector.broadcast %24 : vector<1x128xf32> to vector<8x128xf32>
    %26 = arith.mulf %23, %25 : vector<8x128xf32>
    %c0_7 = arith.constant 0 : index
    %c0_8 = arith.constant 0 : index
    %27 = vector.load %arg4[%c0_7, %c0_8] : memref<1x128xf32, #tpu.memory_space<vmem>>, vector<1x128xf32>
    %28 = vector.broadcast %27 : vector<1x128xf32> to vector<8x128xf32>
    %29 = arith.addf %26, %28 : vector<8x128xf32>
    %c0_9 = arith.constant 0 : index
    %c0_10 = arith.constant 0 : index
    %30 = vector.load %arg5[%c0_9, %c0_10] : memref<128x128xf32, #tpu.memory_space<vmem>>, vector<128x128xf32>
    %cst_11 = arith.constant dense<0.000000e+00> : vector<8x128xf32>
    %31 = tpu.matmul %29, %30, %cst_11 {dimension_numbers = #tpu.dot_dimension_numbers<[1], [0], [0], [1], [0, 0, 1, 1], [], []>} : vector<8x128xf32>, vector<128x128xf32>, vector<8x128xf32> -> vector<8x128xf32>
    %c0_12 = arith.constant 0 : index
    %c0_13 = arith.constant 0 : index
    %32 = vector.load %arg6[%c0_12, %c0_13] : memref<1x128xf32, #tpu.memory_space<vmem>>, vector<1x128xf32>
    %33 = vector.broadcast %32 : vector<1x128xf32> to vector<8x128xf32>
    %34 = arith.addf %31, %33 : vector<8x128xf32>
    %cst_14 = arith.constant 0.000000e+00 : f32
    %35 = vector.broadcast %cst_14 : f32 to vector<8x128xf32>
    %36 = arith.maximumf %34, %35 : vector<8x128xf32>
    %c0_15 = arith.constant 0 : index
    %c0_16 = arith.constant 0 : index
    %37 = vector.load %arg7[%c0_15, %c0_16] : memref<128x128xf32, #tpu.memory_space<vmem>>, vector<128x128xf32>
    %cst_17 = arith.constant dense<0.000000e+00> : vector<8x128xf32>
    %38 = tpu.matmul %36, %37, %cst_17 {dimension_numbers = #tpu.dot_dimension_numbers<[1], [0], [0], [1], [0, 0, 1, 1], [], []>} : vector<8x128xf32>, vector<128x128xf32>, vector<8x128xf32> -> vector<8x128xf32>
    %c0_18 = arith.constant 0 : index
    %c0_19 = arith.constant 0 : index
    %39 = vector.load %arg8[%c0_18, %c0_19] : memref<1x128xf32, #tpu.memory_space<vmem>>, vector<1x128xf32>
    %40 = vector.broadcast %39 : vector<1x128xf32> to vector<8x128xf32>
    %41 = arith.addf %38, %40 : vector<8x128xf32>
    %cst_20 = arith.constant 0.000000e+00 : f32
    %42 = vector.broadcast %cst_20 : f32 to vector<8x128xf32>
    %43 = arith.maximumf %41, %42 : vector<8x128xf32>
    %c0_21 = arith.constant 0 : index
    %c0_22 = arith.constant 0 : index
    %44 = vector.load %arg9[%c0_21, %c0_22] : memref<128x128xf32, #tpu.memory_space<vmem>>, vector<128x128xf32>
    %cst_23 = arith.constant dense<0.000000e+00> : vector<8x128xf32>
    %45 = tpu.matmul %43, %44, %cst_23 {dimension_numbers = #tpu.dot_dimension_numbers<[1], [0], [0], [1], [0, 0, 1, 1], [], []>} : vector<8x128xf32>, vector<128x128xf32>, vector<8x128xf32> -> vector<8x128xf32>
    %c0_24 = arith.constant 0 : index
    %c0_25 = arith.constant 0 : index
    %46 = vector.load %arg10[%c0_24, %c0_25] : memref<1x128xf32, #tpu.memory_space<vmem>>, vector<1x128xf32>
    %47 = vector.broadcast %46 : vector<1x128xf32> to vector<8x128xf32>
    %48 = arith.addf %45, %47 : vector<8x128xf32>
    %49 = tpu.iota {dimensions = array<i32: 1>} : vector<1x128xi32>
    %c16_i32 = arith.constant 16 : i32
    %50 = vector.broadcast %c16_i32 : i32 to vector<1x128xi32>
    %51 = arith.cmpi slt, %49, %50 : vector<1x128xi32>
    %cst_26 = arith.constant -1.000000e+30 : f32
    %52 = vector.shape_cast %51 : vector<1x128xi1> to vector<1x128xi1>
    %53 = vector.broadcast %52 : vector<1x128xi1> to vector<8x128xi1>
    %54 = vector.broadcast %cst_26 : f32 to vector<8x128xf32>
    %55 = arith.select %53, %48, %54 : vector<8x128xi1>, vector<8x128xf32>
    %cst_27 = arith.constant dense<0xFF800000> : vector<8xf32>
    %56 = vector.multi_reduction <maximumf>, %55, %cst_27 [1] : vector<8x128xf32> to vector<8xf32>
    %57 = vector.shape_cast %56 : vector<8xf32> to vector<8x1xf32>
    %58 = vector.broadcast %57 : vector<8x1xf32> to vector<8x128xf32>
    %59 = arith.subf %55, %58 : vector<8x128xf32>
    %60 = math.exp %59 : vector<8x128xf32>
    %cst_28 = arith.constant dense<0.000000e+00> : vector<8xf32>
    %61 = vector.multi_reduction <add>, %60, %cst_28 [1] : vector<8x128xf32> to vector<8xf32>
    %62 = vector.shape_cast %61 : vector<8xf32> to vector<8x1xf32>
    %63 = tpu.reciprocal %62 {approx = true} : vector<8x1xf32> -> vector<8x1xf32>
    %64 = vector.broadcast %63 : vector<8x1xf32> to vector<8x128xf32>
    %65 = arith.mulf %60, %64 : vector<8x128xf32>
    %66 = arith.sitofp %49 : vector<1x128xi32> to vector<1x128xf32>
    %cst_29 = arith.constant 5.000000e-01 : f32
    %67 = vector.broadcast %cst_29 : f32 to vector<1x128xf32>
    %68 = arith.addf %66, %67 : vector<1x128xf32>
    %cst_30 = arith.constant 6.250000e+00 : f32
    %69 = vector.broadcast %cst_30 : f32 to vector<1x128xf32>
    %70 = arith.mulf %68, %69 : vector<1x128xf32>
    %71 = vector.broadcast %70 : vector<1x128xf32> to vector<8x128xf32>
    %72 = arith.mulf %65, %71 : vector<8x128xf32>
    %cst_31 = arith.constant dense<0.000000e+00> : vector<8xf32>
    %73 = vector.multi_reduction <add>, %72, %cst_31 [1] : vector<8x128xf32> to vector<8xf32>
    %74 = vector.shape_cast %73 : vector<8xf32> to vector<8x1xf32>
    %c16_i32_32 = arith.constant 16 : i32
    %75 = vector.broadcast %c16_i32_32 : i32 to vector<1x128xi32>
    %76 = arith.cmpi eq, %49, %75 : vector<1x128xi32>
    %77 = vector.shape_cast %76 : vector<1x128xi1> to vector<1x128xi1>
    %78 = vector.broadcast %77 : vector<1x128xi1> to vector<8x128xi1>
    %79 = vector.shape_cast %74 : vector<8x1xf32> to vector<8x1xf32>
    %80 = vector.broadcast %79 : vector<8x1xf32> to vector<8x128xf32>
    %81 = arith.select %78, %80, %48 : vector<8x128xi1>, vector<8x128xf32>
    %c0_33 = arith.constant 0 : index
    %c0_34 = arith.constant 0 : index
    %82 = vector.load %arg13[%c0_33, %c0_34] : memref<8x128xf32, #tpu.memory_space<vmem>>, vector<8x128xf32>
    tpu.vector_store %arg13[%c0_33, %c0_34], %81 {strides = array<i32>} : memref<8x128xf32, #tpu.memory_space<vmem>>, vector<8x128xf32>,
    %c0_35 = arith.constant 0 : index
    %c0_36 = arith.constant 0 : index
    %83 = vector.load %arg2[%c0_35, %c0_36] : memref<8x128xf32, #tpu.memory_space<vmem>>, vector<8x128xf32>
    %c0_37 = arith.constant 0 : index
    %c0_38 = arith.constant 0 : index
    %84 = vector.load %arg11[%c0_37, %c0_38] : memref<128x128xf32, #tpu.memory_space<vmem>>, vector<128x128xf32>
    %cst_39 = arith.constant dense<0.000000e+00> : vector<8x128xf32>
    %85 = tpu.matmul %83, %84, %cst_39 {dimension_numbers = #tpu.dot_dimension_numbers<[1], [0], [0], [1], [0, 0, 1, 1], [], []>} : vector<8x128xf32>, vector<128x128xf32>, vector<8x128xf32> -> vector<8x128xf32>
    %c0_40 = arith.constant 0 : index
    %c0_41 = arith.constant 0 : index
    %86 = vector.load %arg12[%c0_40, %c0_41] : memref<1x128xf32, #tpu.memory_space<vmem>>, vector<1x128xf32>
    %87 = vector.broadcast %86 : vector<1x128xf32> to vector<8x128xf32>
    %88 = arith.addf %85, %87 : vector<8x128xf32>
    %c0_42 = arith.constant 0 : index
    %c0_43 = arith.constant 0 : index
    %89 = vector.load %arg14[%c0_42, %c0_43] : memref<8x128xf32, #tpu.memory_space<vmem>>, vector<8x128xf32>
    tpu.vector_store %arg14[%c0_42, %c0_43], %88 {strides = array<i32>} : memref<8x128xf32, #tpu.memory_space<vmem>>, vector<8x128xf32>,
    return
  }
  func.func @transform_0(%arg0: i32) -> (i32, i32) {
    %c0_i32 = arith.constant 0 : i32
    %c0_i32_0 = arith.constant 0 : i32
    return %arg0, %c0_i32 : i32, i32
  }
  func.func @transform_1(%arg0: i32) -> (i32, i32) {
    %c0_i32 = arith.constant 0 : i32
    %c0_i32_0 = arith.constant 0 : i32
    return %arg0, %c0_i32 : i32, i32
  }
  func.func @transform_2(%arg0: i32) -> (i32, i32) {
    %c0_i32 = arith.constant 0 : i32
    %c0_i32_0 = arith.constant 0 : i32
    %c0_i32_1 = arith.constant 0 : i32
    return %c0_i32, %c0_i32_0 : i32, i32
  }
  func.func @transform_3(%arg0: i32) -> (i32, i32) {
    %c0_i32 = arith.constant 0 : i32
    %c0_i32_0 = arith.constant 0 : i32
    %c0_i32_1 = arith.constant 0 : i32
    return %c0_i32, %c0_i32_0 : i32, i32
  }
  func.func @transform_4(%arg0: i32) -> (i32, i32) {
    %c0_i32 = arith.constant 0 : i32
    %c0_i32_0 = arith.constant 0 : i32
    %c0_i32_1 = arith.constant 0 : i32
    return %c0_i32, %c0_i32_0 : i32, i32
  }
  func.func @transform_5(%arg0: i32) -> (i32, i32) {
    %c0_i32 = arith.constant 0 : i32
    %c0_i32_0 = arith.constant 0 : i32
    %c0_i32_1 = arith.constant 0 : i32
    return %c0_i32, %c0_i32_0 : i32, i32
  }
  func.func @transform_6(%arg0: i32) -> (i32, i32) {
    %c0_i32 = arith.constant 0 : i32
    %c0_i32_0 = arith.constant 0 : i32
    %c0_i32_1 = arith.constant 0 : i32
    return %c0_i32, %c0_i32_0 : i32, i32
  }
  func.func @transform_7(%arg0: i32) -> (i32, i32) {
    %c0_i32 = arith.constant 0 : i32
    %c0_i32_0 = arith.constant 0 : i32
    %c0_i32_1 = arith.constant 0 : i32
    return %c0_i32, %c0_i32_0 : i32, i32
  }
  func.func @transform_8(%arg0: i32) -> (i32, i32) {
    %c0_i32 = arith.constant 0 : i32
    %c0_i32_0 = arith.constant 0 : i32
    %c0_i32_1 = arith.constant 0 : i32
    return %c0_i32, %c0_i32_0 : i32, i32
  }
  func.func @transform_9(%arg0: i32) -> (i32, i32) {
    %c0_i32 = arith.constant 0 : i32
    %c0_i32_0 = arith.constant 0 : i32
    %c0_i32_1 = arith.constant 0 : i32
    return %c0_i32, %c0_i32_0 : i32, i32
  }
  func.func @transform_10(%arg0: i32) -> (i32, i32) {
    %c0_i32 = arith.constant 0 : i32
    %c0_i32_0 = arith.constant 0 : i32
    %c0_i32_1 = arith.constant 0 : i32
    return %c0_i32, %c0_i32_0 : i32, i32
  }
  func.func @transform_11(%arg0: i32) -> (i32, i32) {
    %c0_i32 = arith.constant 0 : i32
    %c0_i32_0 = arith.constant 0 : i32
    %c0_i32_1 = arith.constant 0 : i32
    return %c0_i32, %c0_i32_0 : i32, i32
  }
  func.func @transform_12(%arg0: i32) -> (i32, i32) {
    %c0_i32 = arith.constant 0 : i32
    %c0_i32_0 = arith.constant 0 : i32
    return %arg0, %c0_i32 : i32, i32
  }
  func.func @transform_13(%arg0: i32) -> (i32, i32) {
    %c0_i32 = arith.constant 0 : i32
    %c0_i32_0 = arith.constant 0 : i32
    return %arg0, %c0_i32 : i32, i32
  }
}

</mosaic_0001>

<llo_original>
// kernel: _aux_heads.1
$region0: #{_aux_heads.1}
  #allocation0 [shape = 'u32[]', space=smem, size = 0x4, offset = 0x4, fixed_abs, tag = 'smem constant byte address 0x4 - core index']
  #allocation1 [shape = 'u32[144,128]{1,0:T(1,128)}', space=vmem, size = 0x12000, scoped, tag = 'internal scratch']
  %s0 = inlined_call_operand.vmem [shape: f32[8,128], index: 0, kind: input, shape index: {}]
  %s1 = inlined_call_operand.vmem [shape: f32[8,128], index: 1, kind: input, shape index: {}]
  %s2 = inlined_call_operand.vmem [shape: f32[1,128], index: 2, kind: input, shape index: {}]
  %s3 = inlined_call_operand.vmem [shape: f32[1,128], index: 3, kind: input, shape index: {}]
  %s4 = inlined_call_operand.vmem [shape: f32[128,128], index: 4, kind: input, shape index: {}]
  %s5 = inlined_call_operand.vmem [shape: f32[1,128], index: 5, kind: input, shape index: {}]
  %s6 = inlined_call_operand.vmem [shape: f32[128,128], index: 6, kind: input, shape index: {}]
  %s7 = inlined_call_operand.vmem [shape: f32[1,128], index: 7, kind: input, shape index: {}]
  %s8 = inlined_call_operand.vmem [shape: f32[128,128], index: 8, kind: input, shape index: {}]
  %s9 = inlined_call_operand.vmem [shape: f32[1,128], index: 9, kind: input, shape index: {}]
  %s10 = inlined_call_operand.vmem [shape: f32[128,128], index: 10, kind: input, shape index: {}]
  %s11 = inlined_call_operand.vmem [shape: f32[1,128], index: 11, kind: input, shape index: {}]
  %s12 = inlined_call_operand.vmem [shape: f32[8,128], index: 12, kind: output, shape index: {0}]
  %s13 = inlined_call_operand.hbm [shape: f32[8,128], index: 13, kind: output, shape index: {1}]
  %14 = xla_tuple %s12, %s13
  %s15 = sld [smem:[#allocation0]]
  $region66: #{_aux_heads.1} parent=0
    _
  %s17 = ssub.s32 1, %s15
  %s18 = scalar_select 0, %s17, %s15
  $region1: #{_aux_heads.1} parent=0
    #allocation2 [shape = 'u8[4096]{0}', space=vmem, size = 0x1000, scoped, tag = 'output window, operand 1, single buffered']
    #allocation3 [shape = 's32[1]{0}', space=sflag, size = 0x4, scoped, tag = 'scoped memory for _aux_heads.1']
    %19 = vsyncpa [#allocation3], 0
    // Predicated region
    $region2: #{_aux_heads.1} parent=1 // pred_check
      _
    $region3: #{_aux_heads.1} parent=1 // pred_check_branch
      %21 = sbr.rel (0) target = $region5
    $region4: #{_aux_heads.1} parent=1 // pred_region
      _
    $region5: #{_aux_heads.1} parent=1 // pred_fallthru
      _
    // Predicated region
    $region6: #{_aux_heads.1} parent=1 // pred_check
      _
    $region7: #{_aux_heads.1} parent=1 // pred_check_branch
      %23 = sbr.rel (0) target = $region9
    $region8: #{_aux_heads.1} parent=1 // pred_region
      _
    $region9: #{_aux_heads.1} parent=1 // pred_fallthru
      _
    // Predicated region
    $region10: #{_aux_heads.1} parent=1 // pred_check
      _
    $region11: #{_aux_heads.1} parent=1 // pred_check_branch
      %25 = sbr.rel (0) target = $region13
    $region12: #{_aux_heads.1} parent=1 // pred_region
      _
    $region13: #{_aux_heads.1} parent=1 // pred_fallthru
      _
    // Predicated region
    $region14: #{_aux_heads.1} parent=1 // pred_check
      _
    $region15: #{_aux_heads.1} parent=1 // pred_check_branch
      %27 = sbr.rel (0) target = $region17
    $region16: #{_aux_heads.1} parent=1 // pred_region
      _
    $region17: #{_aux_heads.1} parent=1 // pred_fallthru
      _
    // Predicated region
    $region18: #{_aux_heads.1} parent=1 // pred_check
      _
    $region19: #{_aux_heads.1} parent=1 // pred_check_branch
      %29 = sbr.rel (0) target = $region21
    $region20: #{_aux_heads.1} parent=1 // pred_region
      _
    $region21: #{_aux_heads.1} parent=1 // pred_fallthru
      _
    // Predicated region
    $region22: #{_aux_heads.1} parent=1 // pred_check
      _
    $region23: #{_aux_heads.1} parent=1 // pred_check_branch
      %31 = sbr.rel (0) target = $region25
    $region24: #{_aux_heads.1} parent=1 // pred_region
      _
    $region25: #{_aux_heads.1} parent=1 // pred_fallthru
      _
    // Predicated region
    $region26: #{_aux_heads.1} parent=1 // pred_check
      _
    $region27: #{_aux_heads.1} parent=1 // pred_check_branch
      %33 = sbr.rel (0) target = $region29
    $region28: #{_aux_heads.1} parent=1 // pred_region
      _
    $region29: #{_aux_heads.1} parent=1 // pred_fallthru
      _
    // Predicated region
    $region30: #{_aux_heads.1} parent=1 // pred_check
      _
    $region31: #{_aux_heads.1} parent=1 // pred_check_branch
      %35 = sbr.rel (0) target = $region33
    $region32: #{_aux_heads.1} parent=1 // pred_region
      _
    $region33: #{_aux_heads.1} parent=1 // pred_fallthru
      _
    // Predicated region
    $region34: #{_aux_heads.1} parent=1 // pred_check
      _
    $region35: #{_aux_heads.1} parent=1 // pred_check_branch
      %37 = sbr.rel (0) target = $region37
    $region36: #{_aux_heads.1} parent=1 // pred_region
      _
    $region37: #{_aux_heads.1} parent=1 // pred_fallthru
      _
    // Predicated region
    $region38: #{_aux_heads.1} parent=1 // pred_check
      _
    $region39: #{_aux_heads.1} parent=1 // pred_check_branch
      %39 = sbr.rel (0) target = $region41
    $region40: #{_aux_heads.1} parent=1 // pred_region
      _
    $region41: #{_aux_heads.1} parent=1 // pred_fallthru
      _
    // Predicated region
    $region42: #{_aux_heads.1} parent=1 // pred_check
      _
    $region43: #{_aux_heads.1} parent=1 // pred_check_branch
      %41 = sbr.rel (0) target = $region45
    $region44: #{_aux_heads.1} parent=1 // pred_region
      _
    $region45: #{_aux_heads.1} parent=1 // pred_fallthru
      _
    // Predicated region
    $region46: #{_aux_heads.1} parent=1 // pred_check
      _
    $region47: #{_aux_heads.1} parent=1 // pred_check_branch
      %43 = sbr.rel (0) target = $region49
    $region48: #{_aux_heads.1} parent=1 // pred_region
      _
    $region49: #{_aux_heads.1} parent=1 // pred_fallthru
      _
    %v44 = vld [vmem:[%s0] sm:$0xff]
    %v45 = vlaneseq
    %v46 = vand.u32 %v45, 127
    %vm47 = vcmp.lt.s32.totalorder %v46, 32
    %v48 = vsel %vm47, 1, 0
    %v49 = vcvt.s32.f32 %v48
    %50 = vadd.xlane.f32.xlu0 %v44
    %v51 = vpop.xlane.xlu0 %50
    %v52 = vmul.f32 %v51, 0.03125
    %v53 = vsub.f32 %v44, %v52
    %v54 = vmul.f32 %v53, %v49
    %v55 = vmul.f32 %v54, %v54
    %56 = vadd.xlane.f32.xlu0 %v55
    %v57 = vpop.xlane.xlu0 %56
    %v58 = vmul.f32 %v57, 0.03125
    %v59 = vadd.f32 %v58, 1e-05
    %v60 = vrsqrt.pop %v59
    %v61 = vmul.f32 %v54, %v60
    %v62 = vld [vmem:[%s2] sm:$0x1]
    %v64 = vlaneseq
    %v65 = vshrl.u32 %v64, 7
    %v66 = vsub.s32 0, %v65
    %v67 = vrot.slane %v62, %v66
    %v69 = vmul.f32 %v61, %v67
    %v70 = vld [vmem:[%s3] sm:$0x1]
    %v72 = vlaneseq
    %v73 = vshrl.u32 %v72, 7
    %v74 = vsub.s32 0, %v73
    %v75 = vrot.slane %v70, %v74
    %v77 = vadd.f32 %v69, %v75
    %v78 = vld [vmem:[%s4] sm:$0xff]
    %v79 = vld [vmem:[%s4 + $0x8] sm:$0xff]
    %v80 = vld [vmem:[%s4 + $0x10] sm:$0xff]
    %v81 = vld [vmem:[%s4 + $0x18] sm:$0xff]
    %v82 = vld [vmem:[%s4 + $0x20] sm:$0xff]
    %v83 = vld [vmem:[%s4 + $0x28] sm:$0xff]
    %v84 = vld [vmem:[%s4 + $0x30] sm:$0xff]
    %v85 = vld [vmem:[%s4 + $0x38] sm:$0xff]
    %v86 = vld [vmem:[%s4 + $0x40] sm:$0xff]
    %v87 = vld [vmem:[%s4 + $0x48] sm:$0xff]
    %v88 = vld [vmem:[%s4 + $0x50] sm:$0xff]
    %v89 = vld [vmem:[%s4 + $0x58] sm:$0xff]
    %v90 = vld [vmem:[%s4 + $0x60] sm:$0xff]
    %v91 = vld [vmem:[%s4 + $0x68] sm:$0xff]
    %v92 = vld [vmem:[%s4 + $0x70] sm:$0xff]
    %v93 = vld [vmem:[%s4 + $0x78] sm:$0xff]
    %v94 = vld [vmem:[%s5] sm:$0x1]
    %v96 = vlaneseq
    %v97 = vshrl.u32 %v96, 7
    %v98 = vsub.s32 0, %v97
    %v99 = vrot.slane %v94, %v98
    %101 = vmatprep.subr.mxu0 0.0
    %102 = vmatpush1.msra.mxu0 %v78
    %103 = vmatprep.subr.mxu0 0.0
    %104 = vmatpush1.msra.mxu0 %v79
    %105 = vmatprep.subr.mxu0 0.0
    %106 = vmatpush1.msra.mxu0 %v80
    %107 = vmatprep.subr.mxu0 0.0
    %108 = vmatpush1.msra.mxu0 %v81
    %109 = vmatprep.subr.mxu0 0.0
    %110 = vmatpush1.msra.mxu0 %v82
    %111 = vmatprep.subr.mxu0 0.0
    %112 = vmatpush1.msra.mxu0 %v83
    %113 = vmatprep.subr.mxu0 0.0
    %114 = vmatpush1.msra.mxu0 %v84
    %115 = vmatprep.subr.mxu0 0.0
    %116 = vmatpush1.msra.mxu0 %v85
    %117 = vmatprep.subr.mxu0 0.0
    %118 = vmatpush1.msra.mxu0 %v86
    %119 = vmatprep.subr.mxu0 0.0
    %120 = vmatpush1.msra.mxu0 %v87
    %121 = vmatprep.subr.mxu0 0.0
    %122 = vmatpush1.msra.mxu0 %v88
    %123 = vmatprep.subr.mxu0 0.0
    %124 = vmatpush1.msra.mxu0 %v89
    %125 = vmatprep.subr.mxu0 0.0
    %126 = vmatpush1.msra.mxu0 %v90
    %127 = vmatprep.subr.mxu0 0.0
    %128 = vmatpush1.msra.mxu0 %v91
    %129 = vmatprep.subr.mxu0 0.0
    %130 = vmatpush1.msra.mxu0 %v92
    %131 = vmatprep.subr.mxu0 0.0
    %132 = vmatpush1.msra.mxu0 %v93
    %133 = vmatprep.subr.mxu0 0.0
    %134 = vmatpush1.msra.mxu0 0.0
    %135 = vmatprep.subr.mxu0 0.0
    %136 = vmatpush1.msra.mxu0 0.0
    %137 = vmatprep.subr.mxu0 0.0
    %138 = vmatpush1.msra.mxu0 0.0
    %139 = vmatprep.subr.mxu0 0.0
    %140 = vmatpush1.msra.mxu0 0.0
    %141 = vmatprep.subr.mxu0 0.0
    %142 = vmatpush1.msra.mxu0 0.0
    %143 = vmatprep.subr.mxu0 0.0
    %144 = vmatpush1.msra.mxu0 0.0
    %145 = vmatprep.subr.mxu0 0.0
    %146 = vmatpush1.msra.mxu0 0.0
    %147 = vmatprep.subr.mxu0 0.0
    %148 = vmatpush1.msra.mxu0 0.0
    %149 = vmatprep.subr.mxu0 0.0
    %150 = vmatpush1.msra.mxu0 0.0
    %151 = vmatprep.subr.mxu0 0.0
    %152 = vmatpush1.msra.mxu0 0.0
    %153 = vmatprep.subr.mxu0 0.0
    %154 = vmatpush1.msra.mxu0 0.0
    %155 = vmatprep.subr.mxu0 0.0
    %156 = vmatpush1.msra.mxu0 0.0
    %157 = vmatprep.subr.mxu0 0.0
    %158 = vmatpush1.msra.mxu0 0.0
    %159 = vmatprep.subr.mxu0 0.0
    %160 = vmatpush1.msra.mxu0 0.0
    %161 = vmatprep.subr.mxu0 0.0
    %162 = vmatpush1.msra.mxu0 0.0
    %163 = vmatprep.subr.mxu0 0.0
    %164 = vmatpush1.msra.mxu0 0.0
    %165 = vmatprep.mubr.f32.mxu0 0.0
    %166 = vmatmul.mubr.f32.gmra.mrb[0].mxu0 %v77
    %v167 = vpop.f32.mrb[0].mxu0
    %v168 = vadd.f32 %v99, %v167
    %v169 = vpop.f32.mrb[0].mxu0
    %170 = vdwg.mxu0
    %v171 = vmax.f32 %v168, 0.0
    %v172 = vld [vmem:[%s6] sm:$0xff]
    %v173 = vld [vmem:[%s6 + $0x8] sm:$0xff]
    %v174 = vld [vmem:[%s6 + $0x10] sm:$0xff]
    %v175 = vld [vmem:[%s6 + $0x18] sm:$0xff]
    %v176 = vld [vmem:[%s6 + $0x20] sm:$0xff]
    %v177 = vld [vmem:[%s6 + $0x28] sm:$0xff]
    %v178 = vld [vmem:[%s6 + $0x30] sm:$0xff]
    %v179 = vld [vmem:[%s6 + $0x38] sm:$0xff]
    %v180 = vld [vmem:[%s6 + $0x40] sm:$0xff]
    %v181 = vld [vmem:[%s6 + $0x48] sm:$0xff]
    %v182 = vld [vmem:[%s6 + $0x50] sm:$0xff]
    %v183 = vld [vmem:[%s6 + $0x58] sm:$0xff]
    %v184 = vld [vmem:[%s6 + $0x60] sm:$0xff]
    %v185 = vld [vmem:[%s6 + $0x68] sm:$0xff]
    %v186 = vld [vmem:[%s6 + $0x70] sm:$0xff]
    %v187 = vld [vmem:[%s6 + $0x78] sm:$0xff]
    %v188 = vld [vmem:[%s7] sm:$0x1]
    %v190 = vlaneseq
    %v191 = vshrl.u32 %v190, 7
    %v192 = vsub.s32 0, %v191
    %v193 = vrot.slane %v188, %v192
    %195 = vmatprep.subr.mxu0 0.0
    %196 = vmatpush1.msra.mxu0 %v172
    %197 = vmatprep.subr.mxu0 0.0
    %198 = vmatpush1.msra.mxu0 %v173
    %199 = vmatprep.subr.mxu0 0.0
    %200 = vmatpush1.msra.mxu0 %v174
    %201 = vmatprep.subr.mxu0 0.0
    %202 = vmatpush1.msra.mxu0 %v175
    %203 = vmatprep.subr.mxu0 0.0
    %204 = vmatpush1.msra.mxu0 %v176
    %205 = vmatprep.subr.mxu0 0.0
    %206 = vmatpush1.msra.mxu0 %v177
    %207 = vmatprep.subr.mxu0 0.0
    %208 = vmatpush1.msra.mxu0 %v178
    %209 = vmatprep.subr.mxu0 0.0
    %210 = vmatpush1.msra.mxu0 %v179
    %211 = vmatprep.subr.mxu0 0.0
    %212 = vmatpush1.msra.mxu0 %v180
    %213 = vmatprep.subr.mxu0 0.0
    %214 = vmatpush1.msra.mxu0 %v181
    %215 = vmatprep.subr.mxu0 0.0
    %216 = vmatpush1.msra.mxu0 %v182
    %217 = vmatprep.subr.mxu0 0.0
    %218 = vmatpush1.msra.mxu0 %v183
    %219 = vmatprep.subr.mxu0 0.0
    %220 = vmatpush1.msra.mxu0 %v184
    %221 = vmatprep.subr.mxu0 0.0
    %222 = vmatpush1.msra.mxu0 %v185
    %223 = vmatprep.subr.mxu0 0.0
    %224 = vmatpush1.msra.mxu0 %v186
    %225 = vmatprep.subr.mxu0 0.0
    %226 = vmatpush1.msra.mxu0 %v187
    %227 = vmatprep.subr.mxu0 0.0
    %228 = vmatpush1.msra.mxu0 0.0
    %229 = vmatprep.subr.mxu0 0.0
    %230 = vmatpush1.msra.mxu0 0.0
    %231 = vmatprep.subr.mxu0 0.0
    %232 = vmatpush1.msra.mxu0 0.0
    %233 = vmatprep.subr.mxu0 0.0
    %234 = vmatpush1.msra.mxu0 0.0
    %235 = vmatprep.subr.mxu0 0.0
    %236 = vmatpush1.msra.mxu0 0.0
    %237 = vmatprep.subr.mxu0 0.0
    %238 = vmatpush1.msra.mxu0 0.0
    %239 = vmatprep.subr.mxu0 0.0
    %240 = vmatpush1.msra.mxu0 0.0
    %241 = vmatprep.subr.mxu0 0.0
    %242 = vmatpush1.msra.mxu0 0.0
    %243 = vmatprep.subr.mxu0 0.0
    %244 = vmatpush1.msra.mxu0 0.0
    %245 = vmatprep.subr.mxu0 0.0
    %246 = vmatpush1.msra.mxu0 0.0
    %247 = vmatprep.subr.mxu0 0.0
    %248 = vmatpush1.msra.mxu0 0.0
    %249 = vmatprep.subr.mxu0 0.0
    %250 = vmatpush1.msra.mxu0 0.0
    %251 = vmatprep.subr.mxu0 0.0
    %252 = vmatpush1.msra.mxu0 0.0
    %253 = vmatprep.subr.mxu0 0.0
    %254 = vmatpush1.msra.mxu0 0.0
    %255 = vmatprep.subr.mxu0 0.0
    %256 = vmatpush1.msra.mxu0 0.0
    %257 = vmatprep.subr.mxu0 0.0
    %258 = vmatpush1.msra.mxu0 0.0
    %259 = vmatprep.mubr.f32.mxu0 0.0
    %260 = vmatmul.mubr.f32.gmra.mrb[0].mxu0 %v171
    %v261 = vpop.f32.mrb[0].mxu0
    %v262 = vadd.f32 %v193, %v261
    %v263 = vpop.f32.mrb[0].mxu0
    %264 = vdwg.mxu0
    %v265 = vmax.f32 %v262, 0.0
    %v266 = vld [vmem:[%s8] sm:$0xff]
    %v267 = vld [vmem:[%s8 + $0x8] sm:$0xff]
    %v268 = vld [vmem:[%s8 + $0x10] sm:$0xff]
    %v269 = vld [vmem:[%s8 + $0x18] sm:$0xff]
    %v270 = vld [vmem:[%s8 + $0x20] sm:$0xff]
    %v271 = vld [vmem:[%s8 + $0x28] sm:$0xff]
    %v272 = vld [vmem:[%s8 + $0x30] sm:$0xff]
    %v273 = vld [vmem:[%s8 + $0x38] sm:$0xff]
    %v274 = vld [vmem:[%s8 + $0x40] sm:$0xff]
    %v275 = vld [vmem:[%s8 + $0x48] sm:$0xff]
    %v276 = vld [vmem:[%s8 + $0x50] sm:$0xff]
    %v277 = vld [vmem:[%s8 + $0x58] sm:$0xff]
    %v278 = vld [vmem:[%s8 + $0x60] sm:$0xff]
    %v279 = vld [vmem:[%s8 + $0x68] sm:$0xff]
    %v280 = vld [vmem:[%s8 + $0x70] sm:$0xff]
    %v281 = vld [vmem:[%s8 + $0x78] sm:$0xff]
    %v282 = vld [vmem:[%s9] sm:$0x1]
    %v284 = vlaneseq
    %v285 = vshrl.u32 %v284, 7
    %v286 = vsub.s32 0, %v285
    %v287 = vrot.slane %v282, %v286
    %289 = vmatprep.subr.mxu0 0.0
    %290 = vmatpush1.msra.mxu0 %v266
    %291 = vmatprep.subr.mxu0 0.0
    %292 = vmatpush1.msra.mxu0 %v267
    %293 = vmatprep.subr.mxu0 0.0
    %294 = vmatpush1.msra.mxu0 %v268
    %295 = vmatprep.subr.mxu0 0.0
    %296 = vmatpush1.msra.mxu0 %v269
    %297 = vmatprep.subr.mxu0 0.0
    %298 = vmatpush1.msra.mxu0 %v270
    %299 = vmatprep.subr.mxu0 0.0
    %300 = vmatpush1.msra.mxu0 %v271
    %301 = vmatprep.subr.mxu0 0.0
    %302 = vmatpush1.msra.mxu0 %v272
    %303 = vmatprep.subr.mxu0 0.0
    %304 = vmatpush1.msra.mxu0 %v273
    %305 = vmatprep.subr.mxu0 0.0
    %306 = vmatpush1.msra.mxu0 %v274
    %307 = vmatprep.subr.mxu0 0.0
    %308 = vmatpush1.msra.mxu0 %v275
    %309 = vmatprep.subr.mxu0 0.0
    %310 = vmatpush1.msra.mxu0 %v276
    %311 = vmatprep.subr.mxu0 0.0
    %312 = vmatpush1.msra.mxu0 %v277
    %313 = vmatprep.subr.mxu0 0.0
    %314 = vmatpush1.msra.mxu0 %v278
    %315 = vmatprep.subr.mxu0 0.0
    %316 = vmatpush1.msra.mxu0 %v279
    %317 = vmatprep.subr.mxu0 0.0
    %318 = vmatpush1.msra.mxu0 %v280
    %319 = vmatprep.subr.mxu0 0.0
    %320 = vmatpush1.msra.mxu0 %v281
    %321 = vmatprep.subr.mxu0 0.0
    %322 = vmatpush1.msra.mxu0 0.0
    %323 = vmatprep.subr.mxu0 0.0
    %324 = vmatpush1.msra.mxu0 0.0
    %325 = vmatprep.subr.mxu0 0.0
    %326 = vmatpush1.msra.mxu0 0.0
    %327 = vmatprep.subr.mxu0 0.0
    %328 = vmatpush1.msra.mxu0 0.0
    %329 = vmatprep.subr.mxu0 0.0
    %330 = vmatpush1.msra.mxu0 0.0
    %331 = vmatprep.subr.mxu0 0.0
    %332 = vmatpush1.msra.mxu0 0.0
    %333 = vmatprep.subr.mxu0 0.0
    %334 = vmatpush1.msra.mxu0 0.0
    %335 = vmatprep.subr.mxu0 0.0
    %336 = vmatpush1.msra.mxu0 0.0
    %337 = vmatprep.subr.mxu0 0.0
    %338 = vmatpush1.msra.mxu0 0.0
    %339 = vmatprep.subr.mxu0 0.0
    %340 = vmatpush1.msra.mxu0 0.0
    %341 = vmatprep.subr.mxu0 0.0
    %342 = vmatpush1.msra.mxu0 0.0
    %343 = vmatprep.subr.mxu0 0.0
    %344 = vmatpush1.msra.mxu0 0.0
    %345 = vmatprep.subr.mxu0 0.0
    %346 = vmatpush1.msra.mxu0 0.0
    %347 = vmatprep.subr.mxu0 0.0
    %348 = vmatpush1.msra.mxu0 0.0
    %349 = vmatprep.subr.mxu0 0.0
    %350 = vmatpush1.msra.mxu0 0.0
    %351 = vmatprep.subr.mxu0 0.0
    %352 = vmatpush1.msra.mxu0 0.0
    %353 = vmatprep.mubr.f32.mxu0 0.0
    %354 = vmatmul.mubr.f32.gmra.mrb[0].mxu0 %v265
    %v355 = vpop.f32.mrb[0].mxu0
    %v356 = vadd.f32 %v287, %v355
    %v357 = vpop.f32.mrb[0].mxu0
    %358 = vdwg.mxu0
    %vm359 = vcmp.lt.s32.totalorder %v46, 16
    %v360 = vsel %vm359, 1, 0
    %vm361 = vcmp.eq.s32.totalorder %v360, 1
    %v362 = vsel %vm361, %v356, -1e+30
    %363 = vmax.xlane.f32.xlu0 %v362
    %v364 = vpop.xlane.xlu0 %363
    %v365 = vsub.f32 %v362, %v364
    %v366 = vmul.f32 %v365, 1.442695
    %v367 = vpow.pop %v366
    %368 = vadd.xlane.f32.xlu0 %v367
    %v369 = vpop.xlane.xlu0 %368
    %v370 = vrcp.pop %v369
    %v371 = vmul.f32 %v367, %v370
    %v372 = vcvt.s32.f32 %v46
    %v373 = vadd.f32 %v372, 0.5
    %v374 = vmul.f32 %v373, 6.25
    %v375 = vmul.f32 %v371, %v374
    %376 = vadd.xlane.f32.xlu0 %v375
    %v377 = vpop.xlane.xlu0 %376
    %vm378 = vcmp.eq.s32.totalorder %v46, 16
    %v379 = vsel %vm378, 1, 0
    %vm380 = vcmp.eq.s32.totalorder %v379, 1
    %v381 = vsel %vm380, %v377, %v356
    %382 = vst [vmem:[%s12] sm:$0xff] %v381
    %v383 = vld [vmem:[%s1] sm:$0xff]
    %v384 = vld [vmem:[%s10] sm:$0xff]
    %v385 = vld [vmem:[%s10 + $0x8] sm:$0xff]
    %v386 = vld [vmem:[%s10 + $0x10] sm:$0xff]
    %v387 = vld [vmem:[%s10 + $0x18] sm:$0xff]
    %v388 = vld [vmem:[%s10 + $0x20] sm:$0xff]
    %v389 = vld [vmem:[%s10 + $0x28] sm:$0xff]
    %v390 = vld [vmem:[%s10 + $0x30] sm:$0xff]
    %v391 = vld [vmem:[%s10 + $0x38] sm:$0xff]
    %v392 = vld [vmem:[%s10 + $0x40] sm:$0xff]
    %v393 = vld [vmem:[%s10 + $0x48] sm:$0xff]
    %v394 = vld [vmem:[%s10 + $0x50] sm:$0xff]
    %v395 = vld [vmem:[%s10 + $0x58] sm:$0xff]
    %v396 = vld [vmem:[%s10 + $0x60] sm:$0xff]
    %v397 = vld [vmem:[%s10 + $0x68] sm:$0xff]
    %v398 = vld [vmem:[%s10 + $0x70] sm:$0xff]
    %v399 = vld [vmem:[%s10 + $0x78] sm:$0xff]
    %v400 = vld [vmem:[%s11] sm:$0x1]
    %v402 = vlaneseq
    %v403 = vshrl.u32 %v402, 7
    %v404 = vsub.s32 0, %v403
    %v405 = vrot.slane %v400, %v404
    %407 = vmatprep.subr.mxu0 0.0
    %408 = vmatpush1.msra.mxu0 %v384
    %409 = vmatprep.subr.mxu0 0.0
    %410 = vmatpush1.msra.mxu0 %v385
    %411 = vmatprep.subr.mxu0 0.0
    %412 = vmatpush1.msra.mxu0 %v386
    %413 = vmatprep.subr.mxu0 0.0
    %414 = vmatpush1.msra.mxu0 %v387
    %415 = vmatprep.subr.mxu0 0.0
    %416 = vmatpush1.msra.mxu0 %v388
    %417 = vmatprep.subr.mxu0 0.0
    %418 = vmatpush1.msra.mxu0 %v389
    %419 = vmatprep.subr.mxu0 0.0
    %420 = vmatpush1.msra.mxu0 %v390
    %421 = vmatprep.subr.mxu0 0.0
    %422 = vmatpush1.msra.mxu0 %v391
    %423 = vmatprep.subr.mxu0 0.0
    %424 = vmatpush1.msra.mxu0 %v392
    %425 = vmatprep.subr.mxu0 0.0
    %426 = vmatpush1.msra.mxu0 %v393
    %427 = vmatprep.subr.mxu0 0.0
    %428 = vmatpush1.msra.mxu0 %v394
    %429 = vmatprep.subr.mxu0 0.0
    %430 = vmatpush1.msra.mxu0 %v395
    %431 = vmatprep.subr.mxu0 0.0
    %432 = vmatpush1.msra.mxu0 %v396
    %433 = vmatprep.subr.mxu0 0.0
    %434 = vmatpush1.msra.mxu0 %v397
    %435 = vmatprep.subr.mxu0 0.0
    %436 = vmatpush1.msra.mxu0 %v398
    %437 = vmatprep.subr.mxu0 0.0
    %438 = vmatpush1.msra.mxu0 %v399
    %439 = vmatprep.subr.mxu0 0.0
    %440 = vmatpush1.msra.mxu0 0.0
    %441 = vmatprep.subr.mxu0 0.0
    %442 = vmatpush1.msra.mxu0 0.0
    %443 = vmatprep.subr.mxu0 0.0
    %444 = vmatpush1.msra.mxu0 0.0
    %445 = vmatprep.subr.mxu0 0.0
    %446 = vmatpush1.msra.mxu0 0.0
    %447 = vmatprep.subr.mxu0 0.0
    %448 = vmatpush1.msra.mxu0 0.0
    %449 = vmatprep.subr.mxu0 0.0
    %450 = vmatpush1.msra.mxu0 0.0
    %451 = vmatprep.subr.mxu0 0.0
    %452 = vmatpush1.msra.mxu0 0.0
    %453 = vmatprep.subr.mxu0 0.0
    %454 = vmatpush1.msra.mxu0 0.0
    %455 = vmatprep.subr.mxu0 0.0
    %456 = vmatpush1.msra.mxu0 0.0
    %457 = vmatprep.subr.mxu0 0.0
    %458 = vmatpush1.msra.mxu0 0.0
    %459 = vmatprep.subr.mxu0 0.0
    %460 = vmatpush1.msra.mxu0 0.0
    %461 = vmatprep.subr.mxu0 0.0
    %462 = vmatpush1.msra.mxu0 0.0
    %463 = vmatprep.subr.mxu0 0.0
    %464 = vmatpush1.msra.mxu0 0.0
    %465 = vmatprep.subr.mxu0 0.0
    %466 = vmatpush1.msra.mxu0 0.0
    %467 = vmatprep.subr.mxu0 0.0
    %468 = vmatpush1.msra.mxu0 0.0
    %469 = vmatprep.subr.mxu0 0.0
    %470 = vmatpush1.msra.mxu0 0.0
    %471 = vmatprep.mubr.f32.mxu0 0.0
    %472 = vmatmul.mubr.f32.gmra.mrb[0].mxu0 %v383
    %v473 = vpop.f32.mrb[0].mxu0
    %v474 = vadd.f32 %v405, %v473
    %v475 = vpop.f32.mrb[0].mxu0
    %476 = vdwg.mxu0
    %477 = vst [vmem:[#allocation2] sm:$0xff] %v474
    // Predicated region
    $region50: #{_aux_heads.1} parent=1 // pred_check
      _
    $region51: #{_aux_heads.1} parent=1 // pred_check_branch
      %479 = sbr.rel (0) target = $region53
    $region52: #{_aux_heads.1} parent=1 // pred_region
      _
    $region53: #{_aux_heads.1} parent=1 // pred_fallthru
      _
    // Predicated region
    $region54: #{_aux_heads.1} parent=1 // pred_check
      _
    $region55: #{_aux_heads.1} parent=1 // pred_check_branch
      %481 = sbr.rel (0) target = $region57
    $region56: #{_aux_heads.1} parent=1 // pred_region
      %s483 = ssub.s32 128, 128
      %484 = vsyncadd [#allocation3], %s483
      %s486 = sshll.u32 [#allocation2], 4
      %s487 = int_to_ptr.vmem [resolvable:$true] %s486
      %489 = dma.vmem_to_hbm [thread:$0]  %s487, 128, %s13, [#allocation3]
    $region57: #{_aux_heads.1} parent=1 // pred_fallthru
      _
    // Predicated region
    $region58: #{_aux_heads.1} parent=1 // pred_check
      _
    $region59: #{_aux_heads.1} parent=1 // pred_check_branch
      %491 = sbr.rel (0) target = $region61
    $region60: #{_aux_heads.1} parent=1 // pred_region
      _
    $region61: #{_aux_heads.1} parent=1 // pred_fallthru
      _
    // Predicated region
    $region62: #{_aux_heads.1} parent=1 // pred_check
      _
    $region63: #{_aux_heads.1} parent=1 // pred_check_branch
      %493 = sbr.rel (0) target = $region65
    $region64: #{_aux_heads.1} parent=1 // pred_region
      %494 = dma.done [#allocation3], 128
    $region65: #{_aux_heads.1} parent=1 // pred_fallthru
      _
    %495 = vsyncpa [#allocation3], 1

</llo_original>
